<compile_context>
chip_gen: v5e
topology: v5e:2x2
jax: 0.10.0
libtpu: 0.0.40
codegen_flags: <defaults>
</compile_context>

<pallas_src>
import functools

import jax
import jax.numpy as jnp
from jax import lax
from jax.experimental import pallas as pl
from jax.experimental.pallas import tpu as pltpu


def _fused_loss_kernel(dr_ref, dc_ref, a_ref, b_ref, row_ref, col_ref, *,
                       margin, max_violation, actual_b, row_tail, col_tail):
    i = pl.program_id(0)
    j = pl.program_id(1)
    n_i = pl.num_programs(0)
    n_j = pl.num_programs(1)
    tm = a_ref.shape[0]
    tn = b_ref.shape[0]

    # Row accumulator lives in the resident (tm, 1) output block across j.
    # relu() makes every cost >= 0, so zero-init is valid for sum AND max.
    @pl.when(j == 0)
    def _():
        row_ref[...] = jnp.zeros_like(row_ref)

    # (tm, tn) tile of im @ s.T straight off the MXU: contract on the feature
    # axis of both operands (no materialized transpose), f32 accumulation.
    scores = lax.dot_general(
        a_ref[...], b_ref[...],
        dimension_numbers=(((1,), (1,)), ((), ())),
        preferred_element_type=jnp.float32)                      # (tm, tn)

    d_row = dr_ref[...].astype(jnp.float32)                      # (tm, 1) diag of row tile
    d_col = dc_ref[...].astype(jnp.float32)                      # (1, tn) diag of col tile

    def emit(cost_row, cost_col):
        if max_violation:
            row_ref[...] = jnp.maximum(
                row_ref[...], jnp.max(cost_row, axis=1, keepdims=True))
            red_c = jnp.max(cost_col, axis=0, keepdims=True)     # (1, tn)
        else:
            row_ref[...] = row_ref[...] + jnp.sum(cost_row, axis=1, keepdims=True)
            red_c = jnp.sum(cost_col, axis=0, keepdims=True)     # (1, tn)
        # Lane-dense (8, tn) block, written exactly once per (i, j) grid step.
        col_ref[...] = jnp.broadcast_to(red_c, (8, tn))

    # Masking only needed on tiles containing the diagonal or an OOB tail.
    needs_mask = i == j
    if row_tail:
        needs_mask = needs_mask | (i == n_i - 1)
    if col_tail:
        needs_mask = needs_mask | (j == n_j - 1)

    @pl.when(needs_mask)
    def _():
        row_g = i * tm + lax.broadcasted_iota(jnp.int32, (tm, tn), 0)
        col_g = j * tn + lax.broadcasted_iota(jnp.int32, (tm, tn), 1)
        keep = (row_g != col_g) & (row_g < actual_b) & (col_g < actual_b)
        cost_row = jnp.where(keep, jnp.maximum(margin + scores - d_row, 0.0), 0.0)
        cost_col = jnp.where(keep, jnp.maximum(margin + scores - d_col, 0.0), 0.0)
        emit(cost_row, cost_col)

    @pl.when(jnp.logical_not(needs_mask))
    def _():
        emit(jnp.maximum(margin + scores - d_row, 0.0),
             jnp.maximum(margin + scores - d_col, 0.0))


def _pick_tiles(B, D, elem_bytes, tm_max, tn_max):
    # Column tile: MXU-native width; must be a multiple of 128 whenever the
    # column axis is actually split (lane-dense col output / diag view),
    # otherwise a single full-width tile.
    tn = B if B <= tn_max else max(128, (int(tn_max) // 128) * 128)
    if tn >= B:
        tn = B
    # Row tile: as large as a ~36 MiB double-buffered input budget allows
    # (48 MiB scoped VMEM leaves headroom on v7x's 64 MiB physical VMEM).
    budget = 36 * 1024 * 1024
    cap = budget // max(1, 2 * D * elem_bytes) - tn
    tm = min(int(tm_max), int(max(cap, 8)))
    tm = max(8, (tm // 8) * 8)
    if B <= tm:
        tm = B
    return tm, tn


def contrastive_loss(im, s, *, margin=0.0, max_violation=False, norm=True,
                     prefer_bf16_matmul=True, tm_max=1024, tn_max=256):
    B, D = im.shape
    assert s.shape == (B, D), "im and s must share the same (B, D) shape"

    im_f32 = im.astype(jnp.float32)
    s_f32 = s.astype(jnp.float32)
    # diag[r] = <im_r, s_r>; precomputed once in f32 (O(B*D), negligible).
    diag = jnp.sum(im_f32 * s_f32, axis=1)
    diag_row = diag.reshape(B, 1)
    diag_col = diag.reshape(1, B)

    # Feed the MXU bf16 operands (f32 accumulation); also halves HBM bytes.
    if prefer_bf16_matmul and im.dtype == jnp.float32:
        im_m, s_m = im.astype(jnp.bfloat16), s.astype(jnp.bfloat16)
    else:
        im_m, s_m = im, s

    elem_bytes = jnp.dtype(im_m.dtype).itemsize
    tm, tn = _pick_tiles(B, D, elem_bytes, tm_max, tn_max)
    n_i = pl.cdiv(B, tm)
    n_j = pl.cdiv(B, tn)
    row_tail = (B % tm) != 0
    col_tail = (B % tn) != 0

    kernel = functools.partial(
        _fused_loss_kernel,
        margin=float(margin),
        max_violation=bool(max_violation),
        actual_b=int(B),
        row_tail=bool(row_tail),
        col_tail=bool(col_tail),
    )

    # TODO(synk): for extremely large D (blocks no longer fit VMEM even at
    # tm=8) add an innermost K grid axis with a (tm, tn) f32 score accumulator.
    row_red, col_red = pl.pallas_call(
        kernel,
        out_shape=(
            jax.ShapeDtypeStruct((B, 1), jnp.float32),           # per-row reductions
            jax.ShapeDtypeStruct((n_i * 8, B), jnp.float32),     # per (row-tile, col) partials
        ),
        grid_spec=pltpu.PrefetchScalarGridSpec(
            num_scalar_prefetch=0,
            grid=(n_i, n_j),                                     # j innermost (reduction)
            in_specs=[
                pl.BlockSpec((tm, 1), lambda i, j: (i, 0)),      # diag for row tile
                pl.BlockSpec((1, tn), lambda i, j: (0, j)),      # diag for col tile
                pl.BlockSpec((tm, D), lambda i, j: (i, 0)),      # im rows (resident over j)
                pl.BlockSpec((tn, D), lambda i, j: (j, 0)),      # s rows (streamed)
            ],
            out_specs=[
                pl.BlockSpec((tm, 1), lambda i, j: (i, 0)),      # resident row accumulator
                pl.BlockSpec((8, tn), lambda i, j: (i, j)),      # lane-dense col partials
            ],
        ),
        compiler_params=pltpu.CompilerParams(
            dimension_semantics=("parallel", "arbitrary"),
            vmem_limit_bytes=48 * 1024 * 1024,
        ),
    )(diag_row, diag_col, im_m, s_m)

    col_part = col_red.reshape(n_i, 8, B)[:, 0, :]               # drop sublane copies
    if max_violation:
        loss = jnp.sum(row_red) + jnp.sum(jnp.max(col_part, axis=0))
    else:
        loss = jnp.sum(row_red) + jnp.sum(col_part)
    if norm:
        loss = loss / jnp.float32(B * B)
    return loss


def contrastive_loss_ref(im, s, *, margin=0.0, max_violation=False, norm=True):
    """Pure-JAX reference mirroring the PyTorch forward."""
    im = im.astype(jnp.float32)
    s = s.astype(jnp.float32)
    scores = im @ s.T
    B = scores.shape[0]
    diag = jnp.diag(scores).reshape(B, 1)
    cost_s = jnp.maximum(margin + scores - diag, 0.0)
    cost_im = jnp.maximum(margin + scores - diag.T, 0.0)
    eye = jnp.eye(B, dtype=bool)
    cost_s = jnp.where(eye, 0.0, cost_s)
    cost_im = jnp.where(eye, 0.0, cost_im)
    if max_violation:
        cost_s = jnp.max(cost_s, axis=1)
        cost_im = jnp.max(cost_im, axis=0)
    loss = jnp.sum(cost_s) + jnp.sum(cost_im)
    if norm:
        loss = loss / (B * B)
    return loss


if __name__ == "__main__":
    key = jax.random.PRNGKey(0)
    k_im, k_s = jax.random.split(key)

    # 1) Small single-tile case, both reduction modes, exact + bf16-MXU paths.
    B, D = 8, 32
    im = jax.random.normal(k_im, (B, D), dtype=jnp.float32)
    s = jax.random.normal(k_s, (B, D), dtype=jnp.float32)
    for mv in (False, True):
        want = contrastive_loss_ref(im, s, margin=0.2, max_violation=mv, norm=True)
        got = jax.block_until_ready(contrastive_loss(
            im, s, margin=0.2, max_violation=mv, norm=True, prefer_bf16_matmul=False))
        assert jnp.allclose(got, want, rtol=1e-5, atol=1e-5), (mv, got, want)
        got_bf = jax.block_until_ready(contrastive_loss(
            im, s, margin=0.2, max_violation=mv, norm=True))
        assert jnp.allclose(got_bf, want, rtol=3e-2, atol=3e-2), (mv, got_bf, want)

    # 2) Batch not a multiple of 8 (single odd-shaped tile), no norm.
    B2 = 12
    im2 = jax.random.normal(jax.random.PRNGKey(1), (B2, D), dtype=jnp.float32)
    s2 = jax.random.normal(jax.random.PRNGKey(2), (B2, D), dtype=jnp.float32)
    for mv in (False, True):
        got = jax.block_until_ready(contrastive_loss(
            im2, s2, margin=0.3, max_violation=mv, norm=False, prefer_bf16_matmul=False))
        want = contrastive_loss_ref(im2, s2, margin=0.3, max_violation=mv, norm=False)
        assert jnp.allclose(got, want, rtol=1e-5, atol=1e-5), (mv, got, want)

    # 3) Multi-tile path: row + column tails and interior (mask-free) tiles.
    B3 = 300
    im3 = jax.random.normal(jax.random.PRNGKey(3), (B3, D), dtype=jnp.float32)
    s3 = jax.random.normal(jax.random.PRNGKey(4), (B3, D), dtype=jnp.float32)
    for mv in (False, True):
        got = jax.block_until_ready(contrastive_loss(
            im3, s3, margin=0.2, max_violation=mv, norm=True,
            prefer_bf16_matmul=False, tm_max=128, tn_max=256))
        want = contrastive_loss_ref(im3, s3, margin=0.2, max_violation=mv, norm=True)
        assert jnp.allclose(got, want, rtol=1e-4, atol=1e-4), (mv, got, want)

    # 4) Native bf16 inputs (MXU-native path, f32 accumulation).
    im_bf, s_bf = im.astype(jnp.bfloat16), s.astype(jnp.bfloat16)
    got_bf = jax.block_until_ready(contrastive_loss(
        im_bf, s_bf, margin=0.2, max_violation=False, norm=True))
    want_bf = contrastive_loss_ref(im_bf, s_bf, margin=0.2, max_violation=False, norm=True)
    assert jnp.allclose(got_bf, want_bf, rtol=5e-3, atol=5e-3), (got_bf, want_bf)

    print("KERNEL_OK")
</pallas_src>

<mosaic_0001>
module attributes {stable_mosaic.version = 11 : i64} {
  func.func @_fused_loss_kernel(%arg0: i32, %arg1: i32, %arg2: memref<8x1xf32, #tpu.memory_space<vmem>>, %arg3: memref<1x8xf32, #tpu.memory_space<vmem>>, %arg4: memref<8x32xf32, #tpu.memory_space<vmem>>, %arg5: memref<8x32xf32, #tpu.memory_space<vmem>>, %arg6: memref<8x1xf32, #tpu.memory_space<vmem>>, %arg7: memref<8x8xf32, #tpu.memory_space<vmem>>) attributes {dimension_semantics = [#tpu.dimension_semantics<parallel>, #tpu.dimension_semantics<arbitrary>], iteration_bounds = array<i64: 1, 1>, scalar_prefetch = 0 : i64, scratch_operands = 0 : i64, tpu.core_type = #tpu.core_type<tc>, window_params = [{transform_indices = @transform_0, window_bounds = array<i64: 8, 1>}, {transform_indices = @transform_1, window_bounds = array<i64: 1, 8>}, {transform_indices = @transform_2, window_bounds = array<i64: 8, 32>}, {transform_indices = @transform_3, window_bounds = array<i64: 8, 32>}, {transform_indices = @transform_4, window_bounds = array<i64: 8, 1>}, {transform_indices = @transform_5, window_bounds = array<i64: 8, 8>}]} {
    %c0_i32 = arith.constant 0 : i32
    %0 = arith.cmpi eq, %arg1, %c0_i32 : i32
    %1 = arith.extui %0 : i1 to i32
    %c0_i32_0 = arith.constant 0 : i32
    %2 = arith.cmpi ne, %1, %c0_i32_0 : i32
    scf.if %2 {
      %cst_10 = arith.constant 0.000000e+00 : f32
      %14 = vector.broadcast %cst_10 : f32 to vector<8x1xf32>
      %c0_11 = arith.constant 0 : index
      %c0_12 = arith.constant 0 : index
      %15 = vector.load %arg6[%c0_11, %c0_12] : memref<8x1xf32, #tpu.memory_space<vmem>>, vector<8x1xf32>
      tpu.vector_store %arg6[%c0_11, %c0_12], %14 {strides = array<i32>} : memref<8x1xf32, #tpu.memory_space<vmem>>, vector<8x1xf32>,
    } else {
    }
    %c0 = arith.constant 0 : index
    %c0_1 = arith.constant 0 : index
    %3 = vector.load %arg4[%c0, %c0_1] : memref<8x32xf32, #tpu.memory_space<vmem>>, vector<8x32xf32>
    %c0_2 = arith.constant 0 : index
    %c0_3 = arith.constant 0 : index
    %4 = vector.load %arg5[%c0_2, %c0_3] : memref<8x32xf32, #tpu.memory_space<vmem>>, vector<8x32xf32>
    %cst = arith.constant dense<0.000000e+00> : vector<8x8xf32>
    %5 = tpu.matmul %3, %4, %cst {dimension_numbers = #tpu.dot_dimension_numbers<[1], [1], [0], [0], [0, 0, 1, 0], [], []>} : vector<8x32xf32>, vector<8x32xf32>, vector<8x8xf32> -> vector<8x8xf32>
    %c0_4 = arith.constant 0 : index
    %c0_5 = arith.constant 0 : index
    %6 = vector.load %arg2[%c0_4, %c0_5] : memref<8x1xf32, #tpu.memory_space<vmem>>, vector<8x1xf32>
    %c0_6 = arith.constant 0 : index
    %c0_7 = arith.constant 0 : index
    %7 = vector.load %arg3[%c0_6, %c0_7] : memref<1x8xf32, #tpu.memory_space<vmem>>, vector<1x8xf32>
    %8 = arith.cmpi eq, %arg0, %arg1 : i32
    %9 = arith.extui %8 : i1 to i32
    %c0_i32_8 = arith.constant 0 : i32
    %10 = arith.cmpi ne, %9, %c0_i32_8 : i32
    scf.if %10 {
      %c8_i32 = arith.constant 8 : i32
      %14 = arith.muli %arg0, %c8_i32 : i32
      %15 = tpu.iota {dimensions = array<i32: 0>} : vector<8x8xi32>
      %16 = vector.broadcast %14 : i32 to vector<8x8xi32>
      %17 = arith.addi %16, %15 : vector<8x8xi32>
      %c8_i32_10 = arith.constant 8 : i32
      %18 = arith.muli %arg1, %c8_i32_10 : i32
      %19 = tpu.iota {dimensions = array<i32: 1>} : vector<8x8xi32>
      %20 = vector.broadcast %18 : i32 to vector<8x8xi32>
      %21 = arith.addi %20, %19 : vector<8x8xi32>
      %22 = arith.cmpi ne, %17, %21 : vector<8x8xi32>
      %c8_i32_11 = arith.constant 8 : i32
      %23 = vector.broadcast %c8_i32_11 : i32 to vector<8x8xi32>
      %24 = arith.cmpi slt, %17, %23 : vector<8x8xi32>
      %25 = arith.andi %22, %24 : vector<8x8xi1>
      %c8_i32_12 = arith.constant 8 : i32
      %26 = vector.broadcast %c8_i32_12 : i32 to vector<8x8xi32>
      %27 = arith.cmpi slt, %21, %26 : vector<8x8xi32>
      %28 = arith.andi %25, %27 : vector<8x8xi1>
      %cst_13 = arith.constant 2.000000e-01 : f32
      %29 = vector.broadcast %cst_13 : f32 to vector<8x8xf32>
      %30 = arith.addf %29, %5 : vector<8x8xf32>
      %31 = vector.broadcast %6 : vector<8x1xf32> to vector<8x8xf32>
      %32 = arith.subf %30, %31 : vector<8x8xf32>
      %cst_14 = arith.constant 0.000000e+00 : f32
      %33 = vector.broadcast %cst_14 : f32 to vector<8x8xf32>
      %34 = arith.maximumf %32, %33 : vector<8x8xf32>
      %cst_15 = arith.constant 0.000000e+00 : f32
      %35 = vector.broadcast %cst_15 : f32 to vector<8x8xf32>
      %36 = arith.select %28, %34, %35 : vector<8x8xi1>, vector<8x8xf32>
      %cst_16 = arith.constant 2.000000e-01 : f32
      %37 = vector.broadcast %cst_16 : f32 to vector<8x8xf32>
      %38 = arith.addf %37, %5 : vector<8x8xf32>
      %39 = vector.broadcast %7 : vector<1x8xf32> to vector<8x8xf32>
      %40 = arith.subf %38, %39 : vector<8x8xf32>
      %cst_17 = arith.constant 0.000000e+00 : f32
      %41 = vector.broadcast %cst_17 : f32 to vector<8x8xf32>
      %42 = arith.maximumf %40, %41 : vector<8x8xf32>
      %cst_18 = arith.constant 0.000000e+00 : f32
      %43 = vector.broadcast %cst_18 : f32 to vector<8x8xf32>
      %44 = arith.select %28, %42, %43 : vector<8x8xi1>, vector<8x8xf32>
      %c0_19 = arith.constant 0 : index
      %c0_20 = arith.constant 0 : index
      %45 = vector.load %arg6[%c0_19, %c0_20] : memref<8x1xf32, #tpu.memory_space<vmem>>, vector<8x1xf32>
      %cst_21 = arith.constant dense<0.000000e+00> : vector<8xf32>
      %46 = vector.multi_reduction <add>, %36, %cst_21 [1] : vector<8x8xf32> to vector<8xf32>
      %47 = vector.shape_cast %46 : vector<8xf32> to vector<8x1xf32>
      %48 = arith.addf %45, %47 : vector<8x1xf32>
      %c0_22 = arith.constant 0 : index
      %c0_23 = arith.constant 0 : index
      %49 = vector.load %arg6[%c0_22, %c0_23] : memref<8x1xf32, #tpu.memory_space<vmem>>, vector<8x1xf32>
      tpu.vector_store %arg6[%c0_22, %c0_23], %48 {strides = array<i32>} : memref<8x1xf32, #tpu.memory_space<vmem>>, vector<8x1xf32>,
      %cst_24 = arith.constant dense<0.000000e+00> : vector<8xf32>
      %50 = vector.multi_reduction <add>, %44, %cst_24 [0] : vector<8x8xf32> to vector<8xf32>
      %51 = vector.shape_cast %50 : vector<8xf32> to vector<1x8xf32>
      %52 = vector.shape_cast %51 : vector<1x8xf32> to vector<1x8xf32>
      %53 = vector.broadcast %52 : vector<1x8xf32> to vector<8x8xf32>
      %c0_25 = arith.constant 0 : index
      %c0_26 = arith.constant 0 : index
      %54 = vector.load %arg7[%c0_25, %c0_26] : memref<8x8xf32, #tpu.memory_space<vmem>>, vector<8x8xf32>
      tpu.vector_store %arg7[%c0_25, %c0_26], %53 {strides = array<i32>} : memref<8x8xf32, #tpu.memory_space<vmem>>, vector<8x8xf32>,
    } else {
    }
    %true = arith.constant true
    %11 = arith.xori %8, %true : i1
    %12 = arith.extui %11 : i1 to i32
    %c0_i32_9 = arith.constant 0 : i32
    %13 = arith.cmpi ne, %12, %c0_i32_9 : i32
    scf.if %13 {
      %cst_10 = arith.constant 2.000000e-01 : f32
      %14 = vector.broadcast %cst_10 : f32 to vector<8x8xf32>
      %15 = arith.addf %14, %5 : vector<8x8xf32>
      %16 = vector.broadcast %6 : vector<8x1xf32> to vector<8x8xf32>
      %17 = arith.subf %15, %16 : vector<8x8xf32>
      %cst_11 = arith.constant 0.000000e+00 : f32
      %18 = vector.broadcast %cst_11 : f32 to vector<8x8xf32>
      %19 = arith.maximumf %17, %18 : vector<8x8xf32>
      %cst_12 = arith.constant 2.000000e-01 : f32
      %20 = vector.broadcast %cst_12 : f32 to vector<8x8xf32>
      %21 = arith.addf %20, %5 : vector<8x8xf32>
      %22 = vector.broadcast %7 : vector<1x8xf32> to vector<8x8xf32>
      %23 = arith.subf %21, %22 : vector<8x8xf32>
      %cst_13 = arith.constant 0.000000e+00 : f32
      %24 = vector.broadcast %cst_13 : f32 to vector<8x8xf32>
      %25 = arith.maximumf %23, %24 : vector<8x8xf32>
      %c0_14 = arith.constant 0 : index
      %c0_15 = arith.constant 0 : index
      %26 = vector.load %arg6[%c0_14, %c0_15] : memref<8x1xf32, #tpu.memory_space<vmem>>, vector<8x1xf32>
      %cst_16 = arith.constant dense<0.000000e+00> : vector<8xf32>
      %27 = vector.multi_reduction <add>, %19, %cst_16 [1] : vector<8x8xf32> to vector<8xf32>
      %28 = vector.shape_cast %27 : vector<8xf32> to vector<8x1xf32>
      %29 = arith.addf %26, %28 : vector<8x1xf32>
      %c0_17 = arith.constant 0 : index
      %c0_18 = arith.constant 0 : index
      %30 = vector.load %arg6[%c0_17, %c0_18] : memref<8x1xf32, #tpu.memory_space<vmem>>, vector<8x1xf32>
      tpu.vector_store %arg6[%c0_17, %c0_18], %29 {strides = array<i32>} : memref<8x1xf32, #tpu.memory_space<vmem>>, vector<8x1xf32>,
      %cst_19 = arith.constant dense<0.000000e+00> : vector<8xf32>
      %31 = vector.multi_reduction <add>, %25, %cst_19 [0] : vector<8x8xf32> to vector<8xf32>
      %32 = vector.shape_cast %31 : vector<8xf32> to vector<1x8xf32>
      %33 = vector.shape_cast %32 : vector<1x8xf32> to vector<1x8xf32>
      %34 = vector.broadcast %33 : vector<1x8xf32> to vector<8x8xf32>
      %c0_20 = arith.constant 0 : index
      %c0_21 = arith.constant 0 : index
      %35 = vector.load %arg7[%c0_20, %c0_21] : memref<8x8xf32, #tpu.memory_space<vmem>>, vector<8x8xf32>
      tpu.vector_store %arg7[%c0_20, %c0_21], %34 {strides = array<i32>} : memref<8x8xf32, #tpu.memory_space<vmem>>, vector<8x8xf32>,
    } else {
    }
    return
  }
  func.func @transform_0(%arg0: i32, %arg1: i32) -> (i32, i32) {
    %c0_i32 = arith.constant 0 : i32
    %c0_i32_0 = arith.constant 0 : i32
    return %arg0, %c0_i32 : i32, i32
  }
  func.func @transform_1(%arg0: i32, %arg1: i32) -> (i32, i32) {
    %c0_i32 = arith.constant 0 : i32
    %c0_i32_0 = arith.constant 0 : i32
    return %c0_i32, %arg1 : i32, i32
  }
  func.func @transform_2(%arg0: i32, %arg1: i32) -> (i32, i32) {
    %c0_i32 = arith.constant 0 : i32
    %c0_i32_0 = arith.constant 0 : i32
    return %arg0, %c0_i32 : i32, i32
  }
  func.func @transform_3(%arg0: i32, %arg1: i32) -> (i32, i32) {
    %c0_i32 = arith.constant 0 : i32
    %c0_i32_0 = arith.constant 0 : i32
    return %arg1, %c0_i32 : i32, i32
  }
  func.func @transform_4(%arg0: i32, %arg1: i32) -> (i32, i32) {
    %c0_i32 = arith.constant 0 : i32
    %c0_i32_0 = arith.constant 0 : i32
    return %arg0, %c0_i32 : i32, i32
  }
  func.func @transform_5(%arg0: i32, %arg1: i32) -> (i32, i32) {
    %c0_i32 = arith.constant 0 : i32
    return %arg0, %arg1 : i32, i32
  }
}

</mosaic_0001>

<llo_original>
// kernel: tpu_custom_call.1
$region0: #{tpu_custom_call.1}
  #allocation0 [shape = 'u32[]', space=smem, size = 0x4, offset = 0x4, fixed_abs, tag = 'smem constant byte address 0x4 - core index']
  #allocation1 [shape = 'u32[72,128]{1,0:T(1,128)}', space=vmem, size = 0x9000, scoped, tag = 'internal scratch']
  %s0 = inlined_call_operand.vmem [shape: f32[8,1], index: 0, kind: input, shape index: {}]
  %s1 = inlined_call_operand.vmem [shape: f32[1,8], index: 1, kind: input, shape index: {}]
  %s2 = inlined_call_operand.vmem [shape: f32[8,32], index: 2, kind: input, shape index: {}]
  %s3 = inlined_call_operand.hbm [shape: f32[8,32], index: 3, kind: input, shape index: {}]
  %s4 = inlined_call_operand.vmem [shape: f32[8,1], index: 4, kind: output, shape index: {0}]
  %s5 = inlined_call_operand.hbm [shape: f32[8,8], index: 5, kind: output, shape index: {1}]
  %6 = xla_tuple %s4, %s5
  %s7 = sld [smem:[#allocation0]]
  $region50: #{tpu_custom_call.1} parent=0
    _
  %s9 = ssub.s32 1, %s7
  %s10 = scalar_select 0, %s9, %s7
  $region1: #{tpu_custom_call.1} parent=0
    #allocation2 [shape = 'u8[4096]{0}', space=vmem, size = 0x1000, scoped, tag = 'input window, operand 3, single buffered']
    #allocation3 [shape = 's32[1]{0}', space=sflag, size = 0x4, scoped, tag = 'scoped memory for tpu_custom_call.1']
    #allocation4 [shape = 's32[1]{0}', space=sflag, size = 0x4, scoped, tag = 'scoped memory for tpu_custom_call.1']
    #allocation5 [shape = 'u8[4096]{0}', space=vmem, size = 0x1000, scoped, tag = 'output window, operand 1, single buffered']
    %11 = vsyncpa [#allocation3], 0
    %12 = vsyncpa [#allocation4], 0
    // Predicated region
    $region2: #{tpu_custom_call.1} parent=1 // pred_check
      _
    $region3: #{tpu_custom_call.1} parent=1 // pred_check_branch
      %14 = sbr.rel (0) target = $region5
    $region4: #{tpu_custom_call.1} parent=1 // pred_region
      _
    $region5: #{tpu_custom_call.1} parent=1 // pred_fallthru
      _
    // Predicated region
    $region6: #{tpu_custom_call.1} parent=1 // pred_check
      _
    $region7: #{tpu_custom_call.1} parent=1 // pred_check_branch
      %16 = sbr.rel (0) target = $region9
    $region8: #{tpu_custom_call.1} parent=1 // pred_region
      _
    $region9: #{tpu_custom_call.1} parent=1 // pred_fallthru
      _
    // Predicated region
    $region10: #{tpu_custom_call.1} parent=1 // pred_check
      _
    $region11: #{tpu_custom_call.1} parent=1 // pred_check_branch
      %18 = sbr.rel (0) target = $region13
    $region12: #{tpu_custom_call.1} parent=1 // pred_region
      _
    $region13: #{tpu_custom_call.1} parent=1 // pred_fallthru
      _
    // Predicated region
    $region14: #{tpu_custom_call.1} parent=1 // pred_check
      _
    $region15: #{tpu_custom_call.1} parent=1 // pred_check_branch
      %20 = sbr.rel (0) target = $region17
    $region16: #{tpu_custom_call.1} parent=1 // pred_region
      %22 = vsyncadd [#allocation3], 0
      %s24 = sshll.u32 %s3, 4
      %s25 = int_to_ptr.hbm [resolvable:$true] %s24
      %s26 = sshll.u32 [#allocation2], 4
      %s27 = int_to_ptr.vmem [resolvable:$true] %s26
      %29 = dma.hbm_to_vmem [thread:$0]  %s25, 128, %s27, [#allocation3]
    $region17: #{tpu_custom_call.1} parent=1 // pred_fallthru
      _
    // Predicated region
    $region18: #{tpu_custom_call.1} parent=1 // pred_check
      _
    $region19: #{tpu_custom_call.1} parent=1 // pred_check_branch
      %31 = sbr.rel (0) target = $region21
    $region20: #{tpu_custom_call.1} parent=1 // pred_region
      %33 = dma.done [#allocation3], 128
    $region21: #{tpu_custom_call.1} parent=1 // pred_fallthru
      _
    %p34 = scmp.eq.s32.totalorder 0, 0
    // Predicated region
    $region22: #{tpu_custom_call.1} parent=1 // pred_check
      %p35 = pneg %p34
    $region23: #{tpu_custom_call.1} parent=1 // pred_check_branch
      %37 = sbr.rel (%p35) target = $region25
    $region24: #{tpu_custom_call.1} parent=1 // pred_region
      %vm38 = vcmask 7168
      %39 = vst.msk [vmem:[%s4] sm:$0xff] %vm38, 0.0
    $region25: #{tpu_custom_call.1} parent=1 // pred_fallthru
      _
    %v40 = vld [vmem:[%s2] sm:$0xff]
    %v41 = vld [vmem:[#allocation2] sm:$0xff]
    %vm42 = vcmask 261120
    %v44 = vsel %vm42, %v40, 0
    %v47 = vsel %vm42, %v41, 0
    %49 = vmatpush.xpose.msra.mxu0 0.0
    %50 = vmatpush.xpose.msra.mxu0 0.0
    %51 = vmatpush.xpose.msra.mxu0 0.0
    %52 = vmatpush.xpose.msra.mxu0 0.0
    %53 = vmatpush.xpose.msra.mxu0 0.0
    %54 = vmatpush.xpose.msra.mxu0 0.0
    %55 = vmatpush.xpose.msra.mxu0 0.0
    %56 = vmatpush.xpose.msra.mxu0 0.0
    %57 = vmatpush.xpose.msra.mxu0 0.0
    %58 = vmatpush.xpose.msra.mxu0 0.0
    %59 = vmatpush.xpose.msra.mxu0 0.0
    %60 = vmatpush.xpose.msra.mxu0 0.0
    %61 = vmatpush.xpose.msra.mxu0 0.0
    %62 = vmatpush.xpose.msra.mxu0 0.0
    %63 = vmatpush.xpose.msra.mxu0 0.0
    %64 = vmatpush.xpose.msra.mxu0 %v47
    %65 = vmatmul.f32.gmra.mxu0 %v44
    %v66 = vpop.f32.mrf.mxu0
    %v67 = vadd.f32 0.0, %v66
    %68 = vdwg.mxu0
    %v69 = vld [vmem:[%s0] sm:$0xff]
    %v70 = vld [vmem:[%s1] sm:$0x1]
    %p71 = scmp.eq.s32.totalorder 0, 0
    // Predicated region
    $region26: #{tpu_custom_call.1} parent=1 // pred_check
      %p72 = pneg %p71
    $region27: #{tpu_custom_call.1} parent=1 // pred_check_branch
      %74 = sbr.rel (%p72) target = $region29
    $region28: #{tpu_custom_call.1} parent=1 // pred_region
      %s75 = smul.u32 0, 8
      %v76 = vlaneseq
      %v77 = vshrl.u32 %v76, 7
      %v78 = vstv %s75
      %v79 = vadd.s32 %v78, %v77
      %s80 = smul.u32 0, 8
      %v81 = vlaneseq
      %v82 = vand.u32 %v81, 127
      %v83 = vstv %s80
      %v84 = vadd.s32 %v83, %v82
      %vm85 = vcmp.ne.s32.totalorder %v79, %v84
      %vm86 = vcmp.lt.s32.totalorder %v79, 8
      %vm87 = vmand %vm85, %vm86
      %vm88 = vcmp.lt.s32.totalorder %v84, 8
      %vm89 = vmand %vm87, %vm88
      %v90 = vadd.f32 %v67, 0.2
      %92 = vset.pattern.permute.xlu0 0
      %93 = vperm.xlu0 %92, %v69
      %v94 = vpop.permute.xlu0 %93
      %v96 = vsub.f32 %v90, %v94
      %v97 = vmax.f32 %v96, 0.0
      %v98 = vsel %vm89, %v97, 0.0
      %v100 = vperm.slane %v70, 0
      %v102 = vsub.f32 %v90, %v100
      %v103 = vmax.f32 %v102, 0.0
      %v104 = vsel %vm89, %v103, 0.0
      %v105 = vld [vmem:[%s4] sm:$0xff]
      %vm106 = vcmask 64512
      %v107 = vsel %vm106, %v98, 0.0
      %108 = vadd.xlane.f32.xlu0 %v107
      %v109 = vpop.xlane.xlu0 %108
      %v110 = vadd.f32 %v105, %v109
      %vm111 = vcmask 7168
      %112 = vst.msk [vmem:[%s4] sm:$0xff] %vm111, %v110
      %v113 = vsel %vm106, %v104, 0.0
      %v114 = vrot.slane %v113, 4
      %v115 = vadd.f32 %v113, %v114
      %v116 = vrot.slane %v115, 2
      %v117 = vadd.f32 %v115, %v116
      %v118 = vrot.slane %v117, 1
      %v119 = vadd.f32 %v117, %v118
      %120 = vst.msk [vmem:[#allocation5] sm:$0xff] %vm106, %v119
    $region29: #{tpu_custom_call.1} parent=1 // pred_fallthru
      _
    %p121 = scmp.ne.s32.totalorder 0, 0
    // Predicated region
    $region30: #{tpu_custom_call.1} parent=1 // pred_check
      %p122 = pneg %p121
    $region31: #{tpu_custom_call.1} parent=1 // pred_check_branch
      %124 = sbr.rel (%p122) target = $region33
    $region32: #{tpu_custom_call.1} parent=1 // pred_region
      %v125 = vadd.f32 %v67, 0.2
      %127 = vset.pattern.permute.xlu0 0
      %128 = vperm.xlu0 %127, %v69
      %v129 = vpop.permute.xlu0 %128
      %v131 = vsub.f32 %v125, %v129
      %v132 = vmax.f32 %v131, 0.0
      %v134 = vperm.slane %v70, 0
      %v136 = vsub.f32 %v125, %v134
      %v137 = vmax.f32 %v136, 0.0
      %v138 = vld [vmem:[%s4] sm:$0xff]
      %vm139 = vcmask 64512
      %v140 = vsel %vm139, %v132, 0.0
      %141 = vadd.xlane.f32.xlu0 %v140
      %v142 = vpop.xlane.xlu0 %141
      %v143 = vadd.f32 %v138, %v142
      %vm144 = vcmask 7168
      %145 = vst.msk [vmem:[%s4] sm:$0xff] %vm144, %v143
      %v146 = vsel %vm139, %v137, 0.0
      %v147 = vrot.slane %v146, 4
      %v148 = vadd.f32 %v146, %v147
      %v149 = vrot.slane %v148, 2
      %v150 = vadd.f32 %v148, %v149
      %v151 = vrot.slane %v150, 1
      %v152 = vadd.f32 %v150, %v151
      %153 = vst.msk [vmem:[#allocation5] sm:$0xff] %vm139, %v152
    $region33: #{tpu_custom_call.1} parent=1 // pred_fallthru
      _
    // Predicated region
    $region34: #{tpu_custom_call.1} parent=1 // pred_check
      _
    $region35: #{tpu_custom_call.1} parent=1 // pred_check_branch
      %155 = sbr.rel (0) target = $region37
    $region36: #{tpu_custom_call.1} parent=1 // pred_region
      _
    $region37: #{tpu_custom_call.1} parent=1 // pred_fallthru
      _
    // Predicated region
    $region38: #{tpu_custom_call.1} parent=1 // pred_check
      _
    $region39: #{tpu_custom_call.1} parent=1 // pred_check_branch
      %157 = sbr.rel (0) target = $region41
    $region40: #{tpu_custom_call.1} parent=1 // pred_region
      %159 = vsyncadd [#allocation4], 0
      %s161 = sshll.u32 [#allocation5], 4
      %s162 = int_to_ptr.vmem [resolvable:$true] %s161
      %s163 = sshll.u32 %s5, 4
      %s164 = int_to_ptr.hbm [resolvable:$true] %s163
      %166 = dma.vmem_to_hbm [thread:$0]  %s162, 128, %s164, [#allocation4]
    $region41: #{tpu_custom_call.1} parent=1 // pred_fallthru
      _
    // Predicated region
    $region42: #{tpu_custom_call.1} parent=1 // pred_check
      _
    $region43: #{tpu_custom_call.1} parent=1 // pred_check_branch
      %168 = sbr.rel (0) target = $region45
    $region44: #{tpu_custom_call.1} parent=1 // pred_region
      _
    $region45: #{tpu_custom_call.1} parent=1 // pred_fallthru
      _
    // Predicated region
    $region46: #{tpu_custom_call.1} parent=1 // pred_check
      _
    $region47: #{tpu_custom_call.1} parent=1 // pred_check_branch
      %170 = sbr.rel (0) target = $region49
    $region48: #{tpu_custom_call.1} parent=1 // pred_region
      %172 = dma.done [#allocation4], 128
    $region49: #{tpu_custom_call.1} parent=1 // pred_fallthru
      _
    %173 = vsyncpa [#allocation3], 1
    %174 = vsyncpa [#allocation4], 1

</llo_original>
